<compile_context>
chip_gen: v6e
topology: v6e:2x2x1
jax: 0.10.0
libtpu: 0.0.40
codegen_flags: <defaults>
</compile_context>

<pallas_src>
import functools

import jax
import jax.numpy as jnp
from jax import lax
from jax.experimental import pallas as pl
from jax.experimental.pallas import tpu as pltpu


def _round_up(x, m):
    return ((x + m - 1) // m) * m


def _cdiv(a, b):
    return -(-a // b)


def _sublane(dtype):
    # 8 rows/sublane-group for 4-byte dtypes, 16 for bf16, 32 for int8/fp8.
    return max(8, 32 // jnp.dtype(dtype).itemsize)


def _pick_tile(dim, align, max_tile):
    """Largest power-of-two-ish tile (multiple of `align`, <= max_tile) whose
    whole-tile padding stays under ~12.5%; tiny dims collapse to one block."""
    aligned = _round_up(dim, align)
    if aligned <= max_tile:
        return aligned
    t = max_tile
    while t > align:
        t_al = _round_up(t, align)
        pad = _round_up(dim, t_al) - dim
        if pad * 8 <= dim:
            return t_al
        t //= 2
    return align


def _linear_kernel_direct(x_ref, w_ref, b_ref, o_ref):
    # x_ref: (tm, tk)  w_ref: (tn, tk)  b_ref: (1, tn)  o_ref: (tm, tn) f32.
    # Output block is resident across the K axis (index_map ignores k), so we
    # accumulate straight into it: no scratch, no epilogue copy.
    @pl.when(pl.program_id(2) == 0)
    def _init():
        o_ref[...] = jnp.broadcast_to(b_ref[...], o_ref.shape)

    o_ref[...] += lax.dot_general(
        x_ref[...],
        w_ref[...],
        dimension_numbers=(((1,), (1,)), ((), ())),  # contract K of x with K of W
        preferred_element_type=jnp.float32,
    )


def _linear_kernel_scratch(x_ref, w_ref, b_ref, o_ref, acc_ref):
    # Narrow output dtype: keep an f32 VMEM accumulator, cast once at the end.
    @pl.when(pl.program_id(2) == 0)
    def _init():
        acc_ref[...] = jnp.broadcast_to(b_ref[...], acc_ref.shape)

    acc_ref[...] += lax.dot_general(
        x_ref[...],
        w_ref[...],
        dimension_numbers=(((1,), (1,)), ((), ())),
        preferred_element_type=jnp.float32,
    )

    @pl.when(pl.program_id(2) == pl.num_programs(2) - 1)
    def _finalize():
        o_ref[...] = acc_ref[...].astype(o_ref.dtype)


@functools.partial(jax.jit, static_argnames=("tm", "tn", "tk"))
def linear_forward(x, weight, bias, *, tm=512, tn=512, tk=512):
    """x: (..., K) ; weight: (N, K) ; bias: (N,) or None -> (..., N)."""
    orig_shape = x.shape
    K = orig_shape[-1]
    x2 = x.reshape(-1, K)
    M = x2.shape[0]
    N, Kw = weight.shape
    assert K == Kw, (K, Kw)

    out_dtype = x.dtype
    in_itemsize = jnp.dtype(x.dtype).itemsize
    out_itemsize = jnp.dtype(out_dtype).itemsize

    # Weight stays (N, K): only a dtype cast (matches `weight.to(x.dtype)`),
    # no transpose / extra HBM round-trip.
    w = weight.astype(x.dtype)
    # Bias: cast to x.dtype first (matches `bias.to(x.dtype)`), accumulate in f32.
    if bias is None:
        b32 = jnp.zeros((N,), jnp.float32)
    else:
        b32 = bias.astype(x.dtype).astype(jnp.float32)

    # Dtype-aware tile selection (sublane align for M, lane align for N/K).
    m_align = _sublane(x.dtype)
    tm = _pick_tile(M, m_align, tm)
    tn = _pick_tile(N, 128, tn)
    tk = _pick_tile(K, 128, tk)

    Mp = _round_up(M, tm)
    Np = _round_up(N, tn)
    Kp = _round_up(K, tk)

    # Megacore: make sure the parallel (M, N) grid has >= 2 blocks when possible
    # so v7x's second TensorCore is not idle for small-batch Linears.
    if (Mp // tm) * (Np // tn) == 1 and tn > 128:
        tn = _round_up(_cdiv(tn, 2), 128)
        Np = _round_up(N, tn)

    xp = x2 if (Mp == M and Kp == K) else jnp.pad(x2, ((0, Mp - M), (0, Kp - K)))
    wp = w if (Np == N and Kp == K) else jnp.pad(w, ((0, Np - N), (0, Kp - K)))
    bp = (b32 if Np == N else jnp.pad(b32, (0, Np - N))).reshape(1, Np)

    grid = (Mp // tm, Np // tn, Kp // tk)
    grid_m, grid_n, _ = grid

    use_scratch = jnp.dtype(out_dtype) != jnp.dtype(jnp.float32)
    kernel = _linear_kernel_scratch if use_scratch else _linear_kernel_direct
    scratch_shapes = [pltpu.VMEM((tm, tn), jnp.float32)] if use_scratch else []

    # VMEM budget for this tiling (double-buffered inputs/outputs + scratch),
    # with headroom; capped below v7x's 64 MiB physical VMEM.
    vmem_bytes = (
        2 * tm * tk * in_itemsize        # x tiles
        + 2 * tn * tk * in_itemsize      # W tiles
        + 2 * 1 * tn * 4                 # bias tiles
        + 2 * tm * tn * out_itemsize     # output tiles
        + (tm * tn * 4 if use_scratch else 0)
    )
    vmem_limit = min(64 << 20, max(32 << 20, vmem_bytes + (8 << 20)))

    # Advisory cost, counting redundant re-reads of x and W across the grid.
    cost = pl.CostEstimate(
        flops=2 * Mp * Np * Kp,
        transcendentals=0,
        bytes_accessed=(
            Mp * Kp * in_itemsize * grid_n     # x streamed once per N block
            + Np * Kp * in_itemsize * grid_m   # W streamed once per M block
            + Np * 4 * grid_m                  # bias
            + Mp * Np * out_itemsize           # output written once
        ),
    )

    out = pl.pallas_call(
        kernel,
        out_shape=jax.ShapeDtypeStruct((Mp, Np), out_dtype),
        grid_spec=pltpu.PrefetchScalarGridSpec(
            num_scalar_prefetch=0,
            grid=grid,
            in_specs=[
                pl.BlockSpec((tm, tk), lambda i, j, k: (i, k)),   # x (M, K)
                pl.BlockSpec((tn, tk), lambda i, j, k: (j, k)),   # W (N, K), no transpose
                pl.BlockSpec((1, tn), lambda i, j, k: (0, j)),    # bias (1, N) f32
            ],
            out_specs=pl.BlockSpec((tm, tn), lambda i, j, k: (i, j)),
            scratch_shapes=scratch_shapes,
        ),
        compiler_params=pltpu.CompilerParams(
            dimension_semantics=("parallel", "parallel", "arbitrary"),
            vmem_limit_bytes=vmem_limit,
        ),
        cost_estimate=cost,
    )(xp, wp, bp)

    out = out[:M, :N]
    return out.reshape(*orig_shape[:-1], N)


def weight_init(key, shape, mode, fan_in, fan_out):
    """Deterministic JAX re-implementation of the PyTorch weight_init."""
    if mode == 'kaiming_normal':
        return jnp.sqrt(1.0 / fan_in) * jax.random.normal(key, shape, dtype=jnp.float32)
    if mode == 'kaiming_uniform':
        return jnp.sqrt(3.0 / fan_in) * jax.random.uniform(key, shape, minval=-1.0, maxval=1.0)
    if mode == 'xavier_normal':
        return jnp.sqrt(2.0 / (fan_in + fan_out)) * jax.random.normal(key, shape, dtype=jnp.float32)
    if mode == 'xavier_uniform':
        return jnp.sqrt(6.0 / (fan_in + fan_out)) * jax.random.uniform(key, shape, minval=-1.0, maxval=1.0)
    raise ValueError(f'Invalid init mode "{mode}"')


if __name__ == "__main__":
    key = jax.random.PRNGKey(0)
    k_x, k_w, k_b = jax.random.split(key, 3)

    # Module hyperparameters: Linear(in_features, out_features).
    batch = 8
    in_features = 32
    out_features = 64
    init_mode = 'kaiming_normal'
    init_weight = 1.0
    init_bias = 0.0

    # Parameters (PyTorch convention: weight is (out_features, in_features)).
    weight = weight_init(k_w, (out_features, in_features), init_mode,
                         in_features, out_features) * init_weight
    bias = weight_init(k_b, (out_features,), init_mode,
                       in_features, out_features) * init_bias

    # Input.
    x = jax.random.normal(k_x, (batch, in_features), dtype=jnp.float32)

    # Pallas kernel forward.
    out = linear_forward(x, weight, bias)
    out = jax.block_until_ready(out)

    # Reference check against plain JAX.
    ref = x @ weight.T + bias
    assert out.shape == (batch, out_features), out.shape
    assert jnp.allclose(out, ref, atol=1e-5, rtol=1e-5), float(
        jnp.max(jnp.abs(out - ref)))

    print("KERNEL_OK")
</pallas_src>

<mosaic_0001>
module attributes {stable_mosaic.version = 11 : i64} {
  func.func @_linear_kernel_direct(%arg0: i32, %arg1: i32, %arg2: i32, %arg3: memref<8x128xf32, #tpu.memory_space<vmem>>, %arg4: memref<128x128xf32, #tpu.memory_space<vmem>>, %arg5: memref<1x128xf32, #tpu.memory_space<vmem>>, %arg6: memref<8x128xf32, #tpu.memory_space<vmem>>) attributes {dimension_semantics = [#tpu.dimension_semantics<parallel>, #tpu.dimension_semantics<parallel>, #tpu.dimension_semantics<arbitrary>], iteration_bounds = array<i64: 1, 1, 1>, scalar_prefetch = 0 : i64, scratch_operands = 0 : i64, tpu.core_type = #tpu.core_type<tc>, window_params = [{transform_indices = @transform_0, window_bounds = array<i64: 8, 128>}, {transform_indices = @transform_1, window_bounds = array<i64: 128, 128>}, {transform_indices = @transform_2, window_bounds = array<i64: 1, 128>}, {transform_indices = @transform_3, window_bounds = array<i64: 8, 128>}]} {
    %c0_i32 = arith.constant 0 : i32
    %0 = arith.cmpi eq, %arg2, %c0_i32 : i32
    %1 = arith.extui %0 : i1 to i32
    %c0_i32_0 = arith.constant 0 : i32
    %2 = arith.cmpi ne, %1, %c0_i32_0 : i32
    scf.if %2 {
      %c0_8 = arith.constant 0 : index
      %c0_9 = arith.constant 0 : index
      %9 = vector.load %arg5[%c0_8, %c0_9] : memref<1x128xf32, #tpu.memory_space<vmem>>, vector<1x128xf32>
      %10 = vector.shape_cast %9 : vector<1x128xf32> to vector<1x128xf32>
      %11 = vector.broadcast %10 : vector<1x128xf32> to vector<8x128xf32>
      %c0_10 = arith.constant 0 : index
      %c0_11 = arith.constant 0 : index
      %12 = vector.load %arg6[%c0_10, %c0_11] : memref<8x128xf32, #tpu.memory_space<vmem>>, vector<8x128xf32>
      tpu.vector_store %arg6[%c0_10, %c0_11], %11 {strides = array<i32>} : memref<8x128xf32, #tpu.memory_space<vmem>>, vector<8x128xf32>,
    } else {
    }
    %c0 = arith.constant 0 : index
    %c0_1 = arith.constant 0 : index
    %3 = vector.load %arg6[%c0, %c0_1] : memref<8x128xf32, #tpu.memory_space<vmem>>, vector<8x128xf32>
    %c0_2 = arith.constant 0 : index
    %c0_3 = arith.constant 0 : index
    %4 = vector.load %arg3[%c0_2, %c0_3] : memref<8x128xf32, #tpu.memory_space<vmem>>, vector<8x128xf32>
    %c0_4 = arith.constant 0 : index
    %c0_5 = arith.constant 0 : index
    %5 = vector.load %arg4[%c0_4, %c0_5] : memref<128x128xf32, #tpu.memory_space<vmem>>, vector<128x128xf32>
    %cst = arith.constant dense<0.000000e+00> : vector<8x128xf32>
    %6 = tpu.matmul %4, %5, %cst {dimension_numbers = #tpu.dot_dimension_numbers<[1], [1], [0], [0], [0, 0, 1, 0], [], []>} : vector<8x128xf32>, vector<128x128xf32>, vector<8x128xf32> -> vector<8x128xf32>
    %7 = arith.addf %3, %6 : vector<8x128xf32>
    %c0_6 = arith.constant 0 : index
    %c0_7 = arith.constant 0 : index
    %8 = vector.load %arg6[%c0_6, %c0_7] : memref<8x128xf32, #tpu.memory_space<vmem>>, vector<8x128xf32>
    tpu.vector_store %arg6[%c0_6, %c0_7], %7 {strides = array<i32>} : memref<8x128xf32, #tpu.memory_space<vmem>>, vector<8x128xf32>,
    return
  }
  func.func @transform_0(%arg0: i32, %arg1: i32, %arg2: i32) -> (i32, i32) {
    %c0_i32 = arith.constant 0 : i32
    return %arg0, %arg2 : i32, i32
  }
  func.func @transform_1(%arg0: i32, %arg1: i32, %arg2: i32) -> (i32, i32) {
    %c0_i32 = arith.constant 0 : i32
    return %arg1, %arg2 : i32, i32
  }
  func.func @transform_2(%arg0: i32, %arg1: i32, %arg2: i32) -> (i32, i32) {
    %c0_i32 = arith.constant 0 : i32
    %c0_i32_0 = arith.constant 0 : i32
    return %c0_i32, %arg1 : i32, i32
  }
  func.func @transform_3(%arg0: i32, %arg1: i32, %arg2: i32) -> (i32, i32) {
    %c0_i32 = arith.constant 0 : i32
    return %arg0, %arg1 : i32, i32
  }
}

</mosaic_0001>

<llo_original>
// kernel: linear_forward.1
$region0: #{linear_forward.1}
  #allocation0 [shape = 'u32[]', space=smem, size = 0x4, offset = 0x4, fixed_abs, tag = 'smem constant byte address 0x4 - core index']
  #allocation1 [shape = 'u32[144,128]{1,0:T(1,128)}', space=vmem, size = 0x12000, scoped, tag = 'internal scratch']
  %s0 = inlined_call_operand.vmem [shape: f32[8,128], index: 0, kind: input, shape index: {}]
  %s1 = inlined_call_operand.vmem [shape: f32[128,128], index: 1, kind: input, shape index: {}]
  %s2 = inlined_call_operand.vmem [shape: f32[1,128], index: 2, kind: input, shape index: {}]
  %s3 = inlined_call_operand.hbm [shape: f32[8,128], index: 3, kind: output, shape index: {}]
  %s4 = sld [smem:[#allocation0]]
  $region26: #{linear_forward.1} parent=0
    _
  %s6 = ssub.s32 1, %s4
  %s7 = scalar_select 0, %s6, %s4
  $region1: #{linear_forward.1} parent=0
    #allocation2 [shape = 'u8[4096]{0}', space=vmem, size = 0x1000, scoped, tag = 'output window, operand 0, single buffered']
    #allocation3 [shape = 's32[1]{0}', space=sflag, size = 0x4, scoped, tag = 'scoped memory for linear_forward.1']
    %8 = vsyncpa [#allocation3], 0
    // Predicated region
    $region2: #{linear_forward.1} parent=1 // pred_check
      _
    $region3: #{linear_forward.1} parent=1 // pred_check_branch
      %10 = sbr.rel (0) target = $region5
    $region4: #{linear_forward.1} parent=1 // pred_region
      _
    $region5: #{linear_forward.1} parent=1 // pred_fallthru
      _
    // Predicated region
    $region6: #{linear_forward.1} parent=1 // pred_check
      _
    $region7: #{linear_forward.1} parent=1 // pred_check_branch
      %12 = sbr.rel (0) target = $region9
    $region8: #{linear_forward.1} parent=1 // pred_region
      _
    $region9: #{linear_forward.1} parent=1 // pred_fallthru
      _
    // Predicated region
    $region10: #{linear_forward.1} parent=1 // pred_check
      _
    $region11: #{linear_forward.1} parent=1 // pred_check_branch
      %14 = sbr.rel (0) target = $region13
    $region12: #{linear_forward.1} parent=1 // pred_region
      _
    $region13: #{linear_forward.1} parent=1 // pred_fallthru
      _
    %p15 = scmp.eq.s32.totalorder 0, 0
    // Predicated region
    $region14: #{linear_forward.1} parent=1 // pred_check
      %p16 = pneg %p15
    $region15: #{linear_forward.1} parent=1 // pred_check_branch
      %18 = sbr.rel (%p16) target = $region17
    $region16: #{linear_forward.1} parent=1 // pred_region
      %v19 = vld [vmem:[%s2] sm:$0x1]
      %v21 = vlaneseq
      %v22 = vshrl.u32 %v21, 7
      %v23 = vsub.s32 0, %v22
      %v24 = vrot.slane %v19, %v23
      %26 = vst [vmem:[#allocation2] sm:$0xff] %v24
    $region17: #{linear_forward.1} parent=1 // pred_fallthru
      _
    %v27 = vld [vmem:[#allocation2] sm:$0xff]
    %v28 = vld [vmem:[%s0] sm:$0xff]
    %v29 = vld [vmem:[%s1] sm:$0xff]
    %v30 = vld [vmem:[%s1 + $0x8] sm:$0xff]
    %v31 = vld [vmem:[%s1 + $0x10] sm:$0xff]
    %v32 = vld [vmem:[%s1 + $0x18] sm:$0xff]
    %v33 = vld [vmem:[%s1 + $0x20] sm:$0xff]
    %v34 = vld [vmem:[%s1 + $0x28] sm:$0xff]
    %v35 = vld [vmem:[%s1 + $0x30] sm:$0xff]
    %v36 = vld [vmem:[%s1 + $0x38] sm:$0xff]
    %v37 = vld [vmem:[%s1 + $0x40] sm:$0xff]
    %v38 = vld [vmem:[%s1 + $0x48] sm:$0xff]
    %v39 = vld [vmem:[%s1 + $0x50] sm:$0xff]
    %v40 = vld [vmem:[%s1 + $0x58] sm:$0xff]
    %v41 = vld [vmem:[%s1 + $0x60] sm:$0xff]
    %v42 = vld [vmem:[%s1 + $0x68] sm:$0xff]
    %v43 = vld [vmem:[%s1 + $0x70] sm:$0xff]
    %v44 = vld [vmem:[%s1 + $0x78] sm:$0xff]
    %45 = vmatprep.subr.mxu0 0.0
    %46 = vmatpush1.xpose.msra.mxu0 %v44
    %47 = vmatprep.subr.mxu0 0.0
    %48 = vmatpush1.xpose.msra.mxu0 %v43
    %49 = vmatprep.subr.mxu0 0.0
    %50 = vmatpush1.xpose.msra.mxu0 %v42
    %51 = vmatprep.subr.mxu0 0.0
    %52 = vmatpush1.xpose.msra.mxu0 %v41
    %53 = vmatprep.subr.mxu0 0.0
    %54 = vmatpush1.xpose.msra.mxu0 %v40
    %55 = vmatprep.subr.mxu0 0.0
    %56 = vmatpush1.xpose.msra.mxu0 %v39
    %57 = vmatprep.subr.mxu0 0.0
    %58 = vmatpush1.xpose.msra.mxu0 %v38
    %59 = vmatprep.subr.mxu0 0.0
    %60 = vmatpush1.xpose.msra.mxu0 %v37
    %61 = vmatprep.subr.mxu0 0.0
    %62 = vmatpush1.xpose.msra.mxu0 %v36
    %63 = vmatprep.subr.mxu0 0.0
    %64 = vmatpush1.xpose.msra.mxu0 %v35
    %65 = vmatprep.subr.mxu0 0.0
    %66 = vmatpush1.xpose.msra.mxu0 %v34
    %67 = vmatprep.subr.mxu0 0.0
    %68 = vmatpush1.xpose.msra.mxu0 %v33
    %69 = vmatprep.subr.mxu0 0.0
    %70 = vmatpush1.xpose.msra.mxu0 %v32
    %71 = vmatprep.subr.mxu0 0.0
    %72 = vmatpush1.xpose.msra.mxu0 %v31
    %73 = vmatprep.subr.mxu0 0.0
    %74 = vmatpush1.xpose.msra.mxu0 %v30
    %75 = vmatprep.subr.mxu0 0.0
    %76 = vmatpush1.xpose.msra.mxu0 %v29
    %77 = vmatprep.subr.mxu0 0.0
    %78 = vmatpush2.xpose.msra.mxu0 0.0
    %79 = vmatprep.subr.mxu0 0.0
    %80 = vmatpush2.xpose.msra.mxu0 0.0
    %81 = vmatprep.subr.mxu0 0.0
    %82 = vmatpush2.xpose.msra.mxu0 0.0
    %83 = vmatprep.subr.mxu0 0.0
    %84 = vmatpush2.xpose.msra.mxu0 0.0
    %85 = vmatprep.subr.mxu0 0.0
    %86 = vmatpush2.xpose.msra.mxu0 0.0
    %87 = vmatprep.subr.mxu0 0.0
    %88 = vmatpush2.xpose.msra.mxu0 0.0
    %89 = vmatprep.subr.mxu0 0.0
    %90 = vmatpush2.xpose.msra.mxu0 0.0
    %91 = vmatprep.subr.mxu0 0.0
    %92 = vmatpush2.xpose.msra.mxu0 0.0
    %93 = vmatprep.subr.mxu0 0.0
    %94 = vmatpush2.xpose.msra.mxu0 0.0
    %95 = vmatprep.subr.mxu0 0.0
    %96 = vmatpush2.xpose.msra.mxu0 0.0
    %97 = vmatprep.subr.mxu0 0.0
    %98 = vmatpush2.xpose.msra.mxu0 0.0
    %99 = vmatprep.subr.mxu0 0.0
    %100 = vmatpush2.xpose.msra.mxu0 0.0
    %101 = vmatprep.subr.mxu0 0.0
    %102 = vmatpush2.xpose.msra.mxu0 0.0
    %103 = vmatprep.subr.mxu0 0.0
    %104 = vmatpush2.xpose.msra.mxu0 0.0
    %105 = vmatprep.subr.mxu0 0.0
    %106 = vmatpush2.xpose.msra.mxu0 0.0
    %107 = vmatprep.subr.mxu0 0.0
    %108 = vmatpush2.xpose.msra.mxu0 0.0
    %109 = vmatprep.mubr.f32.mxu0 0.0
    %110 = vmatmul.mubr.f32.gmra.mxu0 %v28
    %v111 = vpop.f32.mrf.mxu0
    %v112 = vadd.f32 0.0, %v111
    %v113 = vpop.f32.mrf.mxu0
    %114 = vdwg.mxu0
    %v115 = vadd.f32 %v27, %v112
    %116 = vst [vmem:[#allocation2] sm:$0xff] %v115
    // Predicated region
    $region18: #{linear_forward.1} parent=1 // pred_check
      _
    $region19: #{linear_forward.1} parent=1 // pred_check_branch
      %118 = sbr.rel (0) target = $region21
    $region20: #{linear_forward.1} parent=1 // pred_region
      %s120 = ssub.s32 128, 128
      %121 = vsyncadd [#allocation3], %s120
      %s123 = sshll.u32 [#allocation2], 4
      %s124 = int_to_ptr.vmem [resolvable:$true] %s123
      %126 = dma.vmem_to_hbm [thread:$0]  %s124, 128, %s3, [#allocation3]
    $region21: #{linear_forward.1} parent=1 // pred_fallthru
      _
    // Predicated region
    $region22: #{linear_forward.1} parent=1 // pred_check
      _
    $region23: #{linear_forward.1} parent=1 // pred_check_branch
      %128 = sbr.rel (0) target = $region25
    $region24: #{linear_forward.1} parent=1 // pred_region
      %129 = dma.done [#allocation3], 128
    $region25: #{linear_forward.1} parent=1 // pred_fallthru
      _
    %130 = vsyncpa [#allocation3], 1

</llo_original>
